<compile_context>
chip_gen: v5e
topology: v5e:2x2
jax: 0.10.0
libtpu: 0.0.40
codegen_flags: <defaults>
</compile_context>

<pallas_src>
import functools

import jax
import jax.numpy as jnp
from jax.experimental import pallas as pl
from jax.experimental.pallas import tpu as pltpu


def _round_up(v, m):
    return (v + m - 1) // m * m


def _vmem_capacity_bytes():
    """Physical per-core VMEM, with a conservative (v7x-safe) fallback."""
    try:
        cap = getattr(pltpu.get_tpu_info(), "vmem_capacity_bytes", None)
        if cap:
            return int(cap)
    except Exception:
        pass
    return 64 << 20


def uniform_loss_kernel(im_ref, jm_ref, xi_ref, xj_ref, hsqi_ref, hsqj_ref,
                        out_ref, gram_ref, *, neg2t, n, tm, tn, kt):
    t = pl.program_id(0)
    k = pl.program_id(1)

    # Partial Gram block on the MXU: contract the feature dim (dim-1 vs dim-1,
    # no explicit transpose), f32 accumulation.
    part = jax.lax.dot_general(
        xi_ref[...], xj_ref[...],
        dimension_numbers=(((1,), (1,)), ((), ())),
        preferred_element_type=jnp.float32)

    if kt > 1:
        # K-blocked feature dim: accumulate the Gram tile across k steps.
        @pl.when(k == 0)
        def _():
            gram_ref[...] = part

        @pl.when(k > 0)
        def _():
            gram_ref[...] += part

    def _finalize():
        gram = part if kt == 1 else gram_ref[...]
        # d2 = ||xi||^2 + ||xj||^2 - 2<xi,xj> = 2*(hsqi + hsqj - gram)
        # exp(-t*d2) = exp(-2t*(hsqi + hsqj - gram))  -> one fewer VPU mul.
        half = jnp.maximum(hsqi_ref[...] + hsqj_ref[...] - gram, 0.0)
        # TODO(synk): optional bf16 exp (2x EUP on v6e/v7x) once profiled;
        # kept f32 for accuracy.
        contrib = jnp.exp(neg2t * half)                          # EUP

        bi = im_ref[t]
        bj = jm_ref[t]
        row0 = bi * tm
        col0 = bj * tn
        # Only diagonal tile-blocks and padding-straddling blocks need the
        # strict-upper-triangle / validity mask (bj >= bi always holds).
        needs_mask = (bi == bj) | (row0 + tm > n) | (col0 + tn > n)

        def _emit(vals):
            # Reduce the (tm, tn) tile to a lane-dense (8, 128) partial-sum
            # block (pure vreg adds, no XLU) written to this pair's output.
            if tm % 8 == 0 and tn % 128 == 0:
                red = vals.reshape(tm // 8, 8, tn // 128, 128).sum(axis=(0, 2))
            else:
                r = jax.lax.broadcasted_iota(jnp.int32, (8, 128), 0)
                c = jax.lax.broadcasted_iota(jnp.int32, (8, 128), 1)
                red = jnp.where((r == 0) & (c == 0), jnp.sum(vals), 0.0)
            out_ref[0] = red.astype(jnp.float32)

        @pl.when(needs_mask)
        def _():
            rows = row0 + jax.lax.broadcasted_iota(jnp.int32, (tm, tn), 0)
            cols = col0 + jax.lax.broadcasted_iota(jnp.int32, (tm, tn), 1)
            mask = (rows < cols) & (rows < n) & (cols < n)
            _emit(jnp.where(mask, contrib, 0.0))

        @pl.when(jnp.logical_not(needs_mask))
        def _():
            _emit(contrib)

    if kt == 1:
        _finalize()
    else:
        pl.when(k == kt - 1)(_finalize)


def uniform_loss(x, temperature=2.0, *, max_tile=256, cast_to_bf16=False):
    """x: (N, D) float array (f32 or bf16). Returns scalar float32 loss."""
    n, d = x.shape
    assert n >= 2, "need at least two samples for pdist"

    # Optionally cast f32 -> bf16 for the Gram matmul only (norms, d2, exp and
    # accumulation stay f32). Off by default: cancellation in
    # ||xi||^2+||xj||^2-2<xi,xj> with a bf16 Gram can exceed tight tolerances.
    mm_dtype = (jnp.bfloat16 if (cast_to_bf16 and x.dtype == jnp.float32)
                else x.dtype)
    itemsize = jnp.dtype(mm_dtype).itemsize

    # Pairwise-matrix tile: MXU-native 256 (or the whole 8-aligned problem if
    # smaller). Never shrunk for large D -- the feature dim is K-blocked.
    tile = min(max_tile, _round_up(n, 8))
    tm = tn = tile
    n_pad = _round_up(n, tile)
    nb = n_pad // tile

    # Upper-triangle tile pairs only, row-major (xi block constant across
    # consecutive steps -> not re-DMA'd).
    pairs = [(bi, bj) for bi in range(nb) for bj in range(bi, nb)]
    num_pairs = len(pairs)
    i_map = jnp.asarray([p[0] for p in pairs], dtype=jnp.int32)
    j_map = jnp.asarray([p[1] for p in pairs], dtype=jnp.int32)

    # VMEM budget with headroom below physical capacity.
    vmem_cap = _vmem_capacity_bytes()
    vmem_limit = int(max(min(vmem_cap - (8 << 20), (vmem_cap * 7) // 8),
                         32 << 20))
    work_budget = vmem_limit - (4 << 20)

    # Fixed VMEM: norm blocks (double-buffered, lane/sublane padded), output
    # block (double-buffered), Gram scratch.
    fixed = (2 * (tm * 128 + 8 * _round_up(tn, 128)) * 4
             + 2 * 8 * 128 * 4
             + tm * tn * 4)
    avail_x = max(work_budget - fixed, 1 << 20)
    max_dk = avail_x // (2 * (tm + tn) * itemsize)   # double-buffered xi + xj
    if d <= max_dk:
        dk, d_pad, kt = d, d, 1
    else:
        dk = max(128, (max_dk // 128) * 128)
        d_pad = _round_up(d, dk)
        kt = d_pad // dk

    # Pad N / D up to tile multiples; padding is masked out / contributes 0.
    xp = x
    if n_pad != n or d_pad != d:
        xp = jnp.pad(xp, ((0, n_pad - n), (0, d_pad - d)))

    # Halved squared norms precomputed once in f32 (no per-tile XLU reduce).
    xf = xp.astype(jnp.float32)
    hsq = 0.5 * jnp.sum(xf * xf, axis=-1)
    hsq_col = hsq.reshape(n_pad, 1)
    hsq_row = hsq.reshape(1, n_pad)
    x_mm = xp.astype(mm_dtype)

    grid = (num_pairs, kt)
    kernel = functools.partial(
        uniform_loss_kernel,
        neg2t=-2.0 * float(temperature), n=n, tm=tm, tn=tn, kt=kt)

    cost = pl.CostEstimate(
        flops=2 * num_pairs * tm * tn * d_pad,
        transcendentals=num_pairs * tm * tn,
        bytes_accessed=int(num_pairs * (tm + tn) * (d_pad * itemsize + 4)
                           + num_pairs * 8 * 128 * 4),
    )

    partials = pl.pallas_call(
        kernel,
        out_shape=jax.ShapeDtypeStruct((num_pairs, 8, 128), jnp.float32),
        grid_spec=pltpu.PrefetchScalarGridSpec(
            num_scalar_prefetch=2,
            grid=grid,
            in_specs=[
                pl.BlockSpec((tm, dk), lambda t, k, im, jm: (im[t], k)),  # xi
                pl.BlockSpec((tn, dk), lambda t, k, im, jm: (jm[t], k)),  # xj
                pl.BlockSpec((tm, 1), lambda t, k, im, jm: (im[t], 0)),   # .5||xi||^2
                pl.BlockSpec((1, tn), lambda t, k, im, jm: (0, jm[t])),   # .5||xj||^2
            ],
            out_specs=pl.BlockSpec((1, 8, 128), lambda t, k, im, jm: (t, 0, 0)),
            scratch_shapes=[pltpu.VMEM((tm, tn), jnp.float32)],
        ),
        compiler_params=pltpu.CompilerParams(
            # Per-pair partial-sum outputs make the pair axis independent, so
            # it is "parallel" (v7x's 2 TensorCores split the grid); the K axis
            # accumulates into scratch and stays "arbitrary".
            dimension_semantics=("parallel", "arbitrary"),
            vmem_limit_bytes=vmem_limit,
        ),
        cost_estimate=cost,
    )(i_map, j_map, x_mm, x_mm, hsq_col, hsq_row)

    count = n * (n - 1) / 2.0
    # Tiny cross-pair reduce + mean + log as a plain-JAX epilogue.
    return jnp.log(jnp.sum(partials) / count)


def uniform_loss_ref(x, temperature=2.0):
    """Pure-JAX reference matching torch.pdist(...).pow(2).mul(-t).exp().mean().log()."""
    n = x.shape[0]
    xf = x.astype(jnp.float32)
    d2 = jnp.sum((xf[:, None, :] - xf[None, :, :]) ** 2, axis=-1)
    iu = jnp.triu_indices(n, k=1)
    vals = jnp.exp(-temperature * d2[iu])
    return jnp.log(jnp.mean(vals))


if __name__ == "__main__":
    key = jax.random.PRNGKey(0)
    N, D = 16, 32  # small synthetic shape: 16 samples, 32-dim features
    x = jax.random.normal(key, (N, D), dtype=jnp.float32)

    temperature = 2.0
    loss = jax.block_until_ready(uniform_loss(x, temperature))
    ref = jax.block_until_ready(uniform_loss_ref(x, temperature))

    assert jnp.allclose(loss, ref, atol=1e-4, rtol=1e-4), (loss, ref)
    print("KERNEL_OK")
</pallas_src>

<mosaic_0001>
module attributes {stable_mosaic.version = 11 : i64} {
  func.func @uniform_loss_kernel(%arg0: i32, %arg1: i32, %arg2: memref<1xi32, #tpu.memory_space<smem>>, %arg3: memref<1xi32, #tpu.memory_space<smem>>, %arg4: memref<16x32xf32, #tpu.memory_space<vmem>>, %arg5: memref<16x32xf32, #tpu.memory_space<vmem>>, %arg6: memref<16x1xf32, #tpu.memory_space<vmem>>, %arg7: memref<1x16xf32, #tpu.memory_space<vmem>>, %arg8: memref<1x8x128xf32, #tpu.memory_space<vmem>>, %arg9: memref<16x16xf32, #tpu.memory_space<vmem>>) attributes {dimension_semantics = [#tpu.dimension_semantics<parallel>, #tpu.dimension_semantics<arbitrary>], iteration_bounds = array<i64: 1, 1>, scalar_prefetch = 2 : i64, scratch_operands = 1 : i64, tpu.core_type = #tpu.core_type<tc>, window_params = [{transform_indices = @transform_0, window_bounds = array<i64: 16, 32>}, {transform_indices = @transform_1, window_bounds = array<i64: 16, 32>}, {transform_indices = @transform_2, window_bounds = array<i64: 16, 1>}, {transform_indices = @transform_3, window_bounds = array<i64: 1, 16>}, {transform_indices = @transform_4, window_bounds = array<i64: 1, 8, 128>}]} {
    %c0 = arith.constant 0 : index
    %c0_0 = arith.constant 0 : index
    %0 = vector.load %arg4[%c0, %c0_0] : memref<16x32xf32, #tpu.memory_space<vmem>>, vector<16x32xf32>
    %c0_1 = arith.constant 0 : index
    %c0_2 = arith.constant 0 : index
    %1 = vector.load %arg5[%c0_1, %c0_2] : memref<16x32xf32, #tpu.memory_space<vmem>>, vector<16x32xf32>
    %cst = arith.constant dense<0.000000e+00> : vector<16x16xf32>
    %2 = tpu.matmul %0, %1, %cst {dimension_numbers = #tpu.dot_dimension_numbers<[1], [1], [0], [0], [0, 0, 1, 0], [], []>} : vector<16x32xf32>, vector<16x32xf32>, vector<16x16xf32> -> vector<16x16xf32>
    %c0_3 = arith.constant 0 : index
    %c0_4 = arith.constant 0 : index
    %3 = vector.load %arg6[%c0_3, %c0_4] : memref<16x1xf32, #tpu.memory_space<vmem>>, vector<16x1xf32>
    %c0_5 = arith.constant 0 : index
    %c0_6 = arith.constant 0 : index
    %4 = vector.load %arg7[%c0_5, %c0_6] : memref<1x16xf32, #tpu.memory_space<vmem>>, vector<1x16xf32>
    %5 = vector.broadcast %3 : vector<16x1xf32> to vector<16x16xf32>
    %6 = vector.broadcast %4 : vector<1x16xf32> to vector<16x16xf32>
    %7 = arith.addf %5, %6 : vector<16x16xf32>
    %8 = arith.subf %7, %2 : vector<16x16xf32>
    %cst_7 = arith.constant 0.000000e+00 : f32
    %9 = vector.broadcast %cst_7 : f32 to vector<16x16xf32>
    %10 = arith.maximumf %8, %9 : vector<16x16xf32>
    %cst_8 = arith.constant -4.000000e+00 : f32
    %11 = vector.broadcast %cst_8 : f32 to vector<16x16xf32>
    %12 = arith.mulf %11, %10 : vector<16x16xf32>
    %13 = math.exp %12 : vector<16x16xf32>
    %14 = arith.index_cast %arg0 : i32 to index
    %15 = memref.load %arg2[%14] : memref<1xi32, #tpu.memory_space<smem>>
    %16 = arith.index_cast %arg0 : i32 to index
    %17 = memref.load %arg3[%16] : memref<1xi32, #tpu.memory_space<smem>>
    %c16_i32 = arith.constant 16 : i32
    %18 = arith.muli %15, %c16_i32 : i32
    %c16_i32_9 = arith.constant 16 : i32
    %19 = arith.muli %17, %c16_i32_9 : i32
    %20 = arith.cmpi eq, %15, %17 : i32
    %c16_i32_10 = arith.constant 16 : i32
    %21 = arith.addi %18, %c16_i32_10 : i32
    %c16_i32_11 = arith.constant 16 : i32
    %22 = arith.cmpi sgt, %21, %c16_i32_11 : i32
    %23 = arith.ori %20, %22 : i1
    %c16_i32_12 = arith.constant 16 : i32
    %24 = arith.addi %19, %c16_i32_12 : i32
    %c16_i32_13 = arith.constant 16 : i32
    %25 = arith.cmpi sgt, %24, %c16_i32_13 : i32
    %26 = arith.ori %23, %25 : i1
    %27 = arith.extui %26 : i1 to i32
    %c0_i32 = arith.constant 0 : i32
    %28 = arith.cmpi ne, %27, %c0_i32 : i32
    scf.if %28 {
      %32 = tpu.iota {dimensions = array<i32: 0>} : vector<16x16xi32>
      %33 = vector.broadcast %18 : i32 to vector<16x16xi32>
      %34 = arith.addi %33, %32 : vector<16x16xi32>
      %35 = tpu.iota {dimensions = array<i32: 1>} : vector<16x16xi32>
      %36 = vector.broadcast %19 : i32 to vector<16x16xi32>
      %37 = arith.addi %36, %35 : vector<16x16xi32>
      %38 = arith.cmpi slt, %34, %37 : vector<16x16xi32>
      %c16_i32_15 = arith.constant 16 : i32
      %39 = vector.broadcast %c16_i32_15 : i32 to vector<16x16xi32>
      %40 = arith.cmpi slt, %34, %39 : vector<16x16xi32>
      %41 = arith.andi %38, %40 : vector<16x16xi1>
      %c16_i32_16 = arith.constant 16 : i32
      %42 = vector.broadcast %c16_i32_16 : i32 to vector<16x16xi32>
      %43 = arith.cmpi slt, %37, %42 : vector<16x16xi32>
      %44 = arith.andi %41, %43 : vector<16x16xi1>
      %cst_17 = arith.constant 0.000000e+00 : f32
      %45 = vector.broadcast %cst_17 : f32 to vector<16x16xf32>
      %46 = arith.select %44, %13, %45 : vector<16x16xi1>, vector<16x16xf32>
      %47 = tpu.iota {dimensions = array<i32: 0>} : vector<8x128xi32>
      %48 = tpu.iota {dimensions = array<i32: 1>} : vector<8x128xi32>
      %c0_i32_18 = arith.constant 0 : i32
      %49 = vector.broadcast %c0_i32_18 : i32 to vector<8x128xi32>
      %50 = arith.cmpi eq, %47, %49 : vector<8x128xi32>
      %c0_i32_19 = arith.constant 0 : i32
      %51 = vector.broadcast %c0_i32_19 : i32 to vector<8x128xi32>
      %52 = arith.cmpi eq, %48, %51 : vector<8x128xi32>
      %53 = arith.andi %50, %52 : vector<8x128xi1>
      %54 = vector.shape_cast %46 : vector<16x16xf32> to vector<1x16x16xf32>
      %cst_20 = arith.constant dense<0.000000e+00> : vector<1xf32>
      %55 = vector.multi_reduction <add>, %54, %cst_20 [1, 2] : vector<1x16x16xf32> to vector<1xf32>
      %56 = vector.shape_cast %55 : vector<1xf32> to vector<1x1x1xf32>
      %57 = vector.extract %56[0, 0, 0] : f32 from vector<1x1x1xf32>
      %cst_21 = arith.constant 0.000000e+00 : f32
      %58 = vector.broadcast %57 : f32 to vector<8x128xf32>
      %59 = vector.broadcast %cst_21 : f32 to vector<8x128xf32>
      %60 = arith.select %53, %58, %59 : vector<8x128xi1>, vector<8x128xf32>
      %c0_22 = arith.constant 0 : index
      %c0_23 = arith.constant 0 : index
      %c0_24 = arith.constant 0 : index
      %61 = vector.load %arg8[%c0_22, %c0_23, %c0_24] : memref<1x8x128xf32, #tpu.memory_space<vmem>>, vector<1x8x128xf32>
      %62 = vector.shape_cast %61 : vector<1x8x128xf32> to vector<8x128xf32>
      %63 = vector.shape_cast %60 : vector<8x128xf32> to vector<1x8x128xf32>
      tpu.vector_store %arg8[%c0_22, %c0_23, %c0_24], %63 {strides = array<i32>} : memref<1x8x128xf32, #tpu.memory_space<vmem>>, vector<1x8x128xf32>,
    } else {
    }
    %true = arith.constant true
    %29 = arith.xori %26, %true : i1
    %30 = arith.extui %29 : i1 to i32
    %c0_i32_14 = arith.constant 0 : i32
    %31 = arith.cmpi ne, %30, %c0_i32_14 : i32
    scf.if %31 {
      %32 = tpu.iota {dimensions = array<i32: 0>} : vector<8x128xi32>
      %33 = tpu.iota {dimensions = array<i32: 1>} : vector<8x128xi32>
      %c0_i32_15 = arith.constant 0 : i32
      %34 = vector.broadcast %c0_i32_15 : i32 to vector<8x128xi32>
      %35 = arith.cmpi eq, %32, %34 : vector<8x128xi32>
      %c0_i32_16 = arith.constant 0 : i32
      %36 = vector.broadcast %c0_i32_16 : i32 to vector<8x128xi32>
      %37 = arith.cmpi eq, %33, %36 : vector<8x128xi32>
      %38 = arith.andi %35, %37 : vector<8x128xi1>
      %39 = vector.shape_cast %13 : vector<16x16xf32> to vector<1x16x16xf32>
      %cst_17 = arith.constant dense<0.000000e+00> : vector<1xf32>
      %40 = vector.multi_reduction <add>, %39, %cst_17 [1, 2] : vector<1x16x16xf32> to vector<1xf32>
      %41 = vector.shape_cast %40 : vector<1xf32> to vector<1x1x1xf32>
      %42 = vector.extract %41[0, 0, 0] : f32 from vector<1x1x1xf32>
      %cst_18 = arith.constant 0.000000e+00 : f32
      %43 = vector.broadcast %42 : f32 to vector<8x128xf32>
      %44 = vector.broadcast %cst_18 : f32 to vector<8x128xf32>
      %45 = arith.select %38, %43, %44 : vector<8x128xi1>, vector<8x128xf32>
      %c0_19 = arith.constant 0 : index
      %c0_20 = arith.constant 0 : index
      %c0_21 = arith.constant 0 : index
      %46 = vector.load %arg8[%c0_19, %c0_20, %c0_21] : memref<1x8x128xf32, #tpu.memory_space<vmem>>, vector<1x8x128xf32>
      %47 = vector.shape_cast %46 : vector<1x8x128xf32> to vector<8x128xf32>
      %48 = vector.shape_cast %45 : vector<8x128xf32> to vector<1x8x128xf32>
      tpu.vector_store %arg8[%c0_19, %c0_20, %c0_21], %48 {strides = array<i32>} : memref<1x8x128xf32, #tpu.memory_space<vmem>>, vector<1x8x128xf32>,
    } else {
    }
    return
  }
  func.func @transform_0(%arg0: i32, %arg1: i32, %arg2: memref<1xi32, #tpu.memory_space<smem>>, %arg3: memref<1xi32, #tpu.memory_space<smem>>) -> (i32, i32) {
    %0 = arith.index_cast %arg0 : i32 to index
    %1 = memref.load %arg2[%0] : memref<1xi32, #tpu.memory_space<smem>>
    %c0_i32 = arith.constant 0 : i32
    return %1, %arg1 : i32, i32
  }
  func.func @transform_1(%arg0: i32, %arg1: i32, %arg2: memref<1xi32, #tpu.memory_space<smem>>, %arg3: memref<1xi32, #tpu.memory_space<smem>>) -> (i32, i32) {
    %0 = arith.index_cast %arg0 : i32 to index
    %1 = memref.load %arg3[%0] : memref<1xi32, #tpu.memory_space<smem>>
    %c0_i32 = arith.constant 0 : i32
    return %1, %arg1 : i32, i32
  }
  func.func @transform_2(%arg0: i32, %arg1: i32, %arg2: memref<1xi32, #tpu.memory_space<smem>>, %arg3: memref<1xi32, #tpu.memory_space<smem>>) -> (i32, i32) {
    %0 = arith.index_cast %arg0 : i32 to index
    %1 = memref.load %arg2[%0] : memref<1xi32, #tpu.memory_space<smem>>
    %c0_i32 = arith.constant 0 : i32
    %c0_i32_0 = arith.constant 0 : i32
    return %1, %c0_i32 : i32, i32
  }
  func.func @transform_3(%arg0: i32, %arg1: i32, %arg2: memref<1xi32, #tpu.memory_space<smem>>, %arg3: memref<1xi32, #tpu.memory_space<smem>>) -> (i32, i32) {
    %0 = arith.index_cast %arg0 : i32 to index
    %1 = memref.load %arg3[%0] : memref<1xi32, #tpu.memory_space<smem>>
    %c0_i32 = arith.constant 0 : i32
    %c0_i32_0 = arith.constant 0 : i32
    return %c0_i32, %1 : i32, i32
  }
  func.func @transform_4(%arg0: i32, %arg1: i32, %arg2: memref<1xi32, #tpu.memory_space<smem>>, %arg3: memref<1xi32, #tpu.memory_space<smem>>) -> (i32, i32, i32) {
    %c0_i32 = arith.constant 0 : i32
    %c0_i32_0 = arith.constant 0 : i32
    %c0_i32_1 = arith.constant 0 : i32
    return %arg0, %c0_i32, %c0_i32_0 : i32, i32, i32
  }
}

</mosaic_0001>

<llo_original>
// kernel: tpu_custom_call.1
$region0: #{tpu_custom_call.1}
  #allocation0 [shape = 'u32[]', space=smem, size = 0x4, offset = 0x4, fixed_abs, tag = 'smem constant byte address 0x4 - core index']
  #allocation1 [shape = 'u32[72,128]{1,0:T(1,128)}', space=vmem, size = 0x9000, scoped, tag = 'internal scratch']
  #allocation2 [shape = 'f32[16,16]{1,0:T(8,128)}', space=vmem, size = 0x2000, scoped, tag = 'scratch operand']
  #allocation3 [shape = 's32[1]{0}', space=sflag, size = 0x4, scoped, tag = 'scoped memory for tpu_custom_call.1']
  #allocation4 [shape = 's32[1]{0:T(128)S(6)}', space=smem, size = 0x200, scoped, tag = 'prefetched SMEM operand 0']
  #allocation5 [shape = 's32[1]{0:T(128)S(6)}', space=smem, size = 0x200, scoped, tag = 'prefetched SMEM operand 1']
  %s0 = inlined_call_operand.<no memory space> [shape: s32[1], index: 0, kind: input, shape index: {}]
  %s1 = inlined_call_operand.<no memory space> [shape: s32[1], index: 1, kind: input, shape index: {}]
  %s2 = inlined_call_operand.vmem [shape: f32[16,32], index: 2, kind: input, shape index: {}]
  %s3 = inlined_call_operand.hbm [shape: f32[16,32], index: 3, kind: input, shape index: {}]
  %s4 = inlined_call_operand.vmem [shape: f32[16,1], index: 4, kind: input, shape index: {}]
  %s5 = inlined_call_operand.vmem [shape: f32[1,16], index: 5, kind: input, shape index: {}]
  %s6 = inlined_call_operand.hbm [shape: f32[1,8,128], index: 6, kind: output, shape index: {}]
  %s7 = sld [smem:[#allocation0]]
  $region38: #{tpu_custom_call.1} parent=0
    _
  %s9 = ssub.s32 1, %s7
  %s10 = scalar_select 0, %s9, %s7
  %11 = sst [smem:[#allocation4]] %s0
  %12 = sst [smem:[#allocation5]] %s1
  $region1: #{tpu_custom_call.1} parent=0
    #allocation6 [shape = 'u8[8192]{0}', space=vmem, size = 0x2000, scoped, tag = 'input window, operand 3, single buffered']
    #allocation7 [shape = 's32[1]{0}', space=sflag, size = 0x4, scoped, tag = 'scoped memory for tpu_custom_call.1']
    #allocation8 [shape = 's32[1]{0}', space=sflag, size = 0x4, scoped, tag = 'scoped memory for tpu_custom_call.1']
    #allocation9 [shape = 'u8[4096]{0}', space=vmem, size = 0x1000, scoped, tag = 'output window, operand 0, single buffered']
    %13 = vsyncpa [#allocation7], 0
    %14 = vsyncpa [#allocation8], 0
    // Predicated region
    $region2: #{tpu_custom_call.1} parent=1 // pred_check
      _
    $region3: #{tpu_custom_call.1} parent=1 // pred_check_branch
      %16 = sbr.rel (0) target = $region5
    $region4: #{tpu_custom_call.1} parent=1 // pred_region
      %s17 = sld [smem:[#allocation4]]
      %s18 = smul.u32 2, %s17
      %p19 = scmp.lt.s32.totalorder %s18, 1
      %s20 = scalar_select %p19, %s18, 1
      %s21 = smul.addr %s20, 8
      %s22 = scalar_lea.vmem %s2, %s21
      %s23 = sld [smem:[#allocation4]]
      %s24 = smul.u32 2, %s23
    $region5: #{tpu_custom_call.1} parent=1 // pred_fallthru
      _
    // Predicated region
    $region6: #{tpu_custom_call.1} parent=1 // pred_check
      _
    $region7: #{tpu_custom_call.1} parent=1 // pred_check_branch
      %26 = sbr.rel (0) target = $region9
    $region8: #{tpu_custom_call.1} parent=1 // pred_region
      %s27 = sld [smem:[#allocation5]]
      %s28 = smul.u32 2, %s27
      %30 = vsyncadd [#allocation7], 0
      %s31 = smul.addr %s28, 8
      %s32 = scalar_lea.hbm %s3, %s31
      %s33 = sshll.u32 %s32, 4
      %s34 = int_to_ptr.hbm [resolvable:$true] %s33
      %s35 = sshll.u32 [#allocation6], 4
      %s36 = int_to_ptr.vmem [resolvable:$true] %s35
      %41 = dma.hbm_to_vmem [thread:$0]  %s34, 256, %s36, [#allocation7], 128, 128, 8
    $region9: #{tpu_custom_call.1} parent=1 // pred_fallthru
      _
    // Predicated region
    $region10: #{tpu_custom_call.1} parent=1 // pred_check
      _
    $region11: #{tpu_custom_call.1} parent=1 // pred_check_branch
      %43 = sbr.rel (0) target = $region13
    $region12: #{tpu_custom_call.1} parent=1 // pred_region
      %s44 = sld [smem:[#allocation4]]
      %s45 = smul.u32 2, %s44
      %p46 = scmp.lt.s32.totalorder %s45, 1
      %s47 = scalar_select %p46, %s45, 1
      %s48 = smul.addr %s47, 8
      %s49 = scalar_lea.vmem %s4, %s48
      %s50 = sld [smem:[#allocation4]]
      %s51 = smul.u32 2, %s50
    $region13: #{tpu_custom_call.1} parent=1 // pred_fallthru
      _
    // Predicated region
    $region14: #{tpu_custom_call.1} parent=1 // pred_check
      _
    $region15: #{tpu_custom_call.1} parent=1 // pred_check_branch
      %53 = sbr.rel (0) target = $region17
    $region16: #{tpu_custom_call.1} parent=1 // pred_region
      %s54 = sld [smem:[#allocation5]]
      %p55 = scmp.lt.s32.totalorder %s54, 0
      %s56 = scalar_select %p55, %s54, 0
      %s57 = scalar_lea.vmem %s5, %s56
      %s58 = sld [smem:[#allocation5]]
    $region17: #{tpu_custom_call.1} parent=1 // pred_fallthru
      _
    // Predicated region
    $region18: #{tpu_custom_call.1} parent=1 // pred_check
      _
    $region19: #{tpu_custom_call.1} parent=1 // pred_check_branch
      %60 = sbr.rel (0) target = $region21
    $region20: #{tpu_custom_call.1} parent=1 // pred_region
      %62 = dma.done [#allocation7], 256
    $region21: #{tpu_custom_call.1} parent=1 // pred_fallthru
      _
    %s63 = sld [smem:[#allocation4]]
    %s64 = smul.u32 2, %s63
    %p65 = scmp.lt.s32.totalorder %s64, 1
    %s66 = scalar_select %p65, %s64, 1
    %s67 = smul.addr %s66, 8
    %s68 = scalar_lea.vmem %s2, %s67
    %s69 = sld [smem:[#allocation4]]
    %s70 = smul.u32 2, %s69
    %p71 = scmp.lt.s32.totalorder %s70, 1
    %s72 = scalar_select %p71, %s70, 1
    %s73 = smul.addr %s72, 8
    %s74 = scalar_lea.vmem %s4, %s73
    %s75 = sld [smem:[#allocation5]]
    %p76 = scmp.lt.s32.totalorder %s75, 0
    %s77 = scalar_select %p76, %s75, 0
    %s78 = scalar_lea.vmem %s5, %s77
    %s79 = sld [smem:[#allocation4]]
    %s80 = smul.u32 2, %s79
    %p81 = scmp.lt.s32.totalorder %s80, 1
    %s82 = scalar_select %p81, %s80, 1
    %s83 = smul.addr %s82, 8
    %s84 = scalar_lea.vmem %s2, %s83
    %s85 = sld [smem:[#allocation4]]
    %s86 = smul.u32 2, %s85
    %s87 = sld [smem:[#allocation5]]
    %s88 = smul.u32 2, %s87
    %s89 = sld [smem:[#allocation4]]
    %s90 = smul.u32 2, %s89
    %p91 = scmp.lt.s32.totalorder %s90, 1
    %s92 = scalar_select %p91, %s90, 1
    %s93 = smul.addr %s92, 8
    %s94 = scalar_lea.vmem %s4, %s93
    %s95 = sld [smem:[#allocation4]]
    %s96 = smul.u32 2, %s95
    %s97 = sld [smem:[#allocation5]]
    %p98 = scmp.lt.s32.totalorder %s97, 0
    %s99 = scalar_select %p98, %s97, 0
    %s100 = scalar_lea.vmem %s5, %s99
    %s101 = sld [smem:[#allocation5]]
    %v102 = vld [vmem:[%s84] sm:$0xff]
    %v103 = vld [vmem:[%s84 + $0x8] sm:$0xff]
    %v104 = vld [vmem:[#allocation6] sm:$0xff]
    %v105 = vld [vmem:[#allocation6 + $0x8] sm:$0xff]
    %vm106 = vcmask 261120
    %v108 = vsel %vm106, %v102, 0
    %v111 = vsel %vm106, %v103, 0
    %v114 = vsel %vm106, %v104, 0
    %v117 = vsel %vm106, %v105, 0
    %119 = vmatpush.xpose.msra.mxu0 0.0
    %120 = vmatpush.xpose.msra.mxu0 0.0
    %121 = vmatpush.xpose.msra.mxu0 0.0
    %122 = vmatpush.xpose.msra.mxu0 0.0
    %123 = vmatpush.xpose.msra.mxu0 0.0
    %124 = vmatpush.xpose.msra.mxu0 0.0
    %125 = vmatpush.xpose.msra.mxu0 0.0
    %126 = vmatpush.xpose.msra.mxu0 0.0
    %127 = vmatpush.xpose.msra.mxu0 0.0
    %128 = vmatpush.xpose.msra.mxu0 0.0
    %129 = vmatpush.xpose.msra.mxu0 0.0
    %130 = vmatpush.xpose.msra.mxu0 0.0
    %131 = vmatpush.xpose.msra.mxu0 0.0
    %132 = vmatpush.xpose.msra.mxu0 0.0
    %133 = vmatpush.xpose.msra.mxu0 %v117
    %134 = vmatpush.xpose.msra.mxu0 %v114
    %135 = vmatmul.f32.gmra.mxu0 %v108
    %v136 = vpop.f32.mrf.mxu0
    %v137 = vadd.f32 0.0, %v136
    %138 = vmatmul.f32.gmra.mxu0 %v111
    %v139 = vpop.f32.mrf.mxu0
    %v140 = vadd.f32 0.0, %v139
    %141 = vdwg.mxu0
    %v142 = vld [vmem:[%s94] sm:$0xff]
    %v143 = vld [vmem:[%s94 + $0x8] sm:$0xff]
    %v144 = vld [vmem:[%s100] sm:$0x1]
    %146 = vset.pattern.permute.xlu0 0
    %147 = vperm.xlu0 %146, %v142
    %v148 = vpop.permute.xlu0 %147
    %151 = vset.pattern.permute.xlu0 0
    %152 = vperm.xlu0 %151, %v143
    %v153 = vpop.permute.xlu0 %152
    %v156 = vperm.slane %v144, 0
    %v158 = vadd.f32 %v148, %v156
    %v159 = vadd.f32 %v153, %v156
    %v160 = vsub.f32 %v158, %v137
    %v161 = vsub.f32 %v159, %v140
    %v162 = vmax.f32 %v160, 0.0
    %v163 = vmax.f32 %v161, 0.0
    %v164 = vmul.f32 %v162, -4.0
    %v165 = vmul.f32 %v163, -4.0
    %v166 = vmul.f32 %v164, 1.442695
    %v167 = vpow.pop %v166
    %v168 = vmul.f32 %v165, 1.442695
    %v169 = vpow.pop %v168
    %s170 = sld [smem:[#allocation4]]
    %s171 = sld [smem:[#allocation5]]
    %s172 = smul.u32 %s170, 16
    %s173 = smul.u32 %s171, 16
    %p174 = scmp.eq.s32.totalorder %s170, %s171
    %s175 = sadd.s32 %s172, 16
    %p176 = scmp.gt.s32.totalorder %s175, 16
    %p177 = por %p174, %p176
    %s178 = sadd.s32 %s173, 16
    %p179 = scmp.gt.s32.totalorder %s178, 16
    %p180 = por %p177, %p179
    // Predicated region
    $region22: #{tpu_custom_call.1} parent=1 // pred_check
      %p181 = pneg %p180
    $region23: #{tpu_custom_call.1} parent=1 // pred_check_branch
      %183 = sbr.rel (%p181) target = $region25
    $region24: #{tpu_custom_call.1} parent=1 // pred_region
      %v184 = vlaneseq
      %v185 = vshrl.u32 %v184, 7
      %v186 = vadd.s32 %v185, 8
      %v187 = vstv %s172
      %v188 = vadd.s32 %v187, %v185
      %v189 = vadd.s32 %v187, %v186
      %v190 = vlaneseq
      %v191 = vand.u32 %v190, 127
      %v192 = vstv %s173
      %v193 = vadd.s32 %v192, %v191
      %vm194 = vcmp.lt.s32.totalorder %v188, %v193
      %vm195 = vcmp.lt.s32.totalorder %v189, %v193
      %vm196 = vcmp.lt.s32.totalorder %v188, 16
      %vm197 = vcmp.lt.s32.totalorder %v189, 16
      %vm198 = vmand %vm194, %vm196
      %vm199 = vmand %vm195, %vm197
      %vm200 = vcmp.lt.s32.totalorder %v193, 16
      %vm201 = vmand %vm198, %vm200
      %vm202 = vmand %vm199, %vm200
      %v203 = vsel %vm201, %v167, 0.0
      %v204 = vsel %vm202, %v169, 0.0
      %vm205 = vcmp.eq.s32.totalorder %v185, 0
      %vm206 = vcmp.eq.s32.totalorder %v191, 0
      %vm207 = vmand %vm205, %vm206
      %vm208 = vcmask 130048
      %v209 = vsel %vm208, %v203, 0.0
      %v210 = vsel %vm208, %v204, 0.0
      %v211 = vadd.f32 %v209, %v210
      %212 = vadd.xlane.f32.xlu0 %v211
      %v213 = vpop.xlane.xlu0 %212
      %v214 = vrot.slane %v213, 4
      %v215 = vadd.f32 %v213, %v214
      %v216 = vrot.slane %v215, 2
      %v217 = vadd.f32 %v215, %v216
      %v218 = vrot.slane %v217, 1
      %v219 = vadd.f32 %v217, %v218
      %s220 = vtos %v219
      %v221 = vstv %s220
      %v222 = vsel %vm207, %v221, 0.0
      %223 = vst [vmem:[#allocation9] sm:$0xff] %v222
    $region25: #{tpu_custom_call.1} parent=1 // pred_fallthru
      _
    %p224 = pneg %p180
    // Predicated region
    $region26: #{tpu_custom_call.1} parent=1 // pred_check
      _
    $region27: #{tpu_custom_call.1} parent=1 // pred_check_branch
      %226 = sbr.rel (%p180) target = $region29
    $region28: #{tpu_custom_call.1} parent=1 // pred_region
      %v227 = vlaneseq
      %v228 = vshrl.u32 %v227, 7
      %v229 = vlaneseq
      %v230 = vand.u32 %v229, 127
      %vm231 = vcmp.eq.s32.totalorder %v228, 0
      %vm232 = vcmp.eq.s32.totalorder %v230, 0
      %vm233 = vmand %vm231, %vm232
      %vm234 = vcmask 130048
      %v235 = vsel %vm234, %v167, 0.0
      %v236 = vsel %vm234, %v169, 0.0
      %v237 = vadd.f32 %v235, %v236
      %238 = vadd.xlane.f32.xlu0 %v237
      %v239 = vpop.xlane.xlu0 %238
      %v240 = vrot.slane %v239, 4
      %v241 = vadd.f32 %v239, %v240
      %v242 = vrot.slane %v241, 2
      %v243 = vadd.f32 %v241, %v242
      %v244 = vrot.slane %v243, 1
      %v245 = vadd.f32 %v243, %v244
      %s246 = vtos %v245
      %v247 = vstv %s246
      %v248 = vsel %vm233, %v247, 0.0
      %249 = vst [vmem:[#allocation9] sm:$0xff] %v248
    $region29: #{tpu_custom_call.1} parent=1 // pred_fallthru
      _
    // Predicated region
    $region30: #{tpu_custom_call.1} parent=1 // pred_check
      _
    $region31: #{tpu_custom_call.1} parent=1 // pred_check_branch
      %251 = sbr.rel (0) target = $region33
    $region32: #{tpu_custom_call.1} parent=1 // pred_region
      %253 = vsyncadd [#allocation8], 0
      %s255 = sshll.u32 [#allocation9], 4
      %s256 = int_to_ptr.vmem [resolvable:$true] %s255
      %s257 = sshll.u32 %s6, 4
      %s258 = int_to_ptr.hbm [resolvable:$true] %s257
      %260 = dma.vmem_to_hbm [thread:$0]  %s256, 128, %s258, [#allocation8]
    $region33: #{tpu_custom_call.1} parent=1 // pred_fallthru
      _
    // Predicated region
    $region34: #{tpu_custom_call.1} parent=1 // pred_check
      _
    $region35: #{tpu_custom_call.1} parent=1 // pred_check_branch
      %262 = sbr.rel (0) target = $region37
    $region36: #{tpu_custom_call.1} parent=1 // pred_region
      %264 = dma.done [#allocation8], 128
    $region37: #{tpu_custom_call.1} parent=1 // pred_fallthru
      _
    %265 = vsyncpa [#allocation7], 1
    %266 = vsyncpa [#allocation8], 1

</llo_original>
